<compile_context>
chip_gen: v6e
topology: v6e:2x2x1
jax: 0.10.0
libtpu: 0.0.40
codegen_flags: <defaults>
</compile_context>

<pallas_src>
import functools

import jax
import jax.numpy as jnp
from jax.experimental import pallas as pl
from jax.experimental.pallas import tpu as pltpu

HP = 128          # padded hidden width (lanes)
NODE_TILE = 256   # default node-row tile for large graphs
EDGE_TILE = 512   # default edge-row tile for large graphs


# ----------------------------- small helpers --------------------------------
def _round_up(x, m):
    return ((x + m - 1) // m) * m


def _row_tiles(dim, pref):
    """Return (padded_dim, tile) with padded_dim % tile == 0 and tile % 8 == 0."""
    if dim >= pref:
        return _round_up(dim, pref), pref
    pad = _round_up(dim, 8)
    return pad, pad


def _pad_to(x, shape):
    pads = [(0, s - d) for d, s in zip(x.shape, shape)]
    return jnp.pad(x, pads)


# --------------------------- fused MLP kernel --------------------------------
def _mlp_kernel(*refs, n_lin, relu_flags, relu_input):
    x_ref = refs[0]
    o_ref = refs[-1]
    y = x_ref[...]                                   # f32 activations
    if relu_input:
        y = jnp.maximum(y, 0.0)
    for l in range(n_lin):
        w = refs[1 + 2 * l][...]                     # bf16 (HP, HP)
        b = refs[2 + 2 * l][...]                     # f32  (1, HP)
        y = jnp.dot(y.astype(jnp.bfloat16), w,
                    preferred_element_type=jnp.float32) + b
        if relu_flags[l]:
            y = jnp.maximum(y, 0.0)
    o_ref[...] = y.astype(o_ref.dtype)


def fused_mlp(x, wbs, relu_flags, relu_input=False, row_tile=256):
    """x: [R_pad, HP] f32; wbs: list of (w_bf16 [HP,HP], b_f32 [1,HP])."""
    r_pad = x.shape[0]
    tr = row_tile
    assert r_pad % tr == 0
    feat = lambda i: (i, 0)
    full = lambda i: (0, 0)
    in_specs = [pl.BlockSpec((tr, HP), feat)]
    args = [x]
    for w, b in wbs:
        in_specs += [pl.BlockSpec((HP, HP), full), pl.BlockSpec((1, HP), full)]
        args += [w, b]
    return pl.pallas_call(
        functools.partial(_mlp_kernel, n_lin=len(wbs),
                          relu_flags=tuple(relu_flags), relu_input=relu_input),
        out_shape=jax.ShapeDtypeStruct((r_pad, HP), jnp.float32),
        grid=(r_pad // tr,),
        in_specs=in_specs,
        out_specs=pl.BlockSpec((tr, HP), feat),
        compiler_params=pltpu.CompilerParams(dimension_semantics=("parallel",)),
    )(*args)


# ------------------------ edge message kernel (per layer) --------------------
def _edge_msg_kernel(src_ref, eh_ref, dst_ref, we_ref, be_ref, m_ref, eh_out_ref):
    eh = eh_ref[...]                                              # f32 (te, HP)
    # single K=384 contraction: [src || eh || dst] @ We  (bf16 in, f32 acc)
    x = jnp.concatenate(
        [src_ref[...], eh.astype(jnp.bfloat16), dst_ref[...]], axis=-1)
    m = jnp.dot(x, we_ref[...], preferred_element_type=jnp.float32) + be_ref[...]
    m = jnp.maximum(m, 0.0)
    m_ref[...] = m.astype(jnp.bfloat16)   # re-read by aggregation kernel -> bf16
    eh_out_ref[...] = m + eh              # edge residual stays f32


def edge_messages(nh_src, eh, nh_dst, we, be, te):
    e_pad = eh.shape[0]
    row = lambda i: (i, 0)
    full = lambda i: (0, 0)
    return pl.pallas_call(
        _edge_msg_kernel,
        out_shape=(jax.ShapeDtypeStruct((e_pad, HP), jnp.bfloat16),   # m
                   jax.ShapeDtypeStruct((e_pad, HP), jnp.float32)),   # eh_out
        grid=(e_pad // te,),
        in_specs=[pl.BlockSpec((te, HP), row),          # nh_src  (bf16)
                  pl.BlockSpec((te, HP), row),          # eh      (f32)
                  pl.BlockSpec((te, HP), row),          # nh_dst  (bf16)
                  pl.BlockSpec((3 * HP, HP), full),     # We      (bf16)
                  pl.BlockSpec((1, HP), full)],         # be      (f32)
        out_specs=(pl.BlockSpec((te, HP), row), pl.BlockSpec((te, HP), row)),
        compiler_params=pltpu.CompilerParams(dimension_semantics=("parallel",)),
    )(nh_src, eh, nh_dst, we, be)


# ---------------- node aggregate + apply kernel (per layer) ------------------
def _node_agg_kernel(dst_ids_ref, m_ref, nh_ref, inv_deg_ref, wn_ref, bn_ref,
                     nh_out_ref, acc_ref):
    i = pl.program_id(0)
    k = pl.program_id(1)
    tn = nh_ref.shape[0]
    te = dst_ids_ref.shape[1]

    @pl.when(k == 0)
    def _():
        acc_ref[...] = jnp.zeros_like(acc_ref)

    # Build the (tn, te) 0/1 selector for this (node-tile, edge-tile) pair from
    # the dst ids (padded edges carry dst = -1 and never match).  Exact in bf16;
    # this replaces the dense [N_pad, E_pad] HBM aggregation matrix.
    row_ids = jax.lax.broadcasted_iota(jnp.int32, (tn, te), 0) + i * tn
    sel = jnp.where(dst_ids_ref[...] == row_ids, 1.0, 0.0).astype(jnp.bfloat16)
    acc_ref[...] += jnp.dot(sel, m_ref[...], preferred_element_type=jnp.float32)

    @pl.when(k == pl.num_programs(1) - 1)
    def _():
        nh = nh_ref[...]                                   # f32 (tn, HP)
        h_agg = acc_ref[...] * inv_deg_ref[...]            # exact f32 1/deg scale
        # single K=256 contraction: [nh || h_agg] @ Wn  (bf16 in, f32 acc)
        x = jnp.concatenate([nh.astype(jnp.bfloat16),
                             h_agg.astype(jnp.bfloat16)], axis=-1)
        h = jnp.dot(x, wn_ref[...], preferred_element_type=jnp.float32) + bn_ref[...]
        h = jnp.maximum(h, 0.0)
        nh_out_ref[...] = h + nh                           # node residual


def node_aggregate_apply(dst_ids, m, nh, inv_deg, wn, bn, tn, te):
    n_pad = nh.shape[0]
    e_pad = m.shape[0]
    return pl.pallas_call(
        _node_agg_kernel,
        out_shape=jax.ShapeDtypeStruct((n_pad, HP), jnp.float32),
        grid=(n_pad // tn, e_pad // te),
        in_specs=[pl.BlockSpec((1, te), lambda i, k: (0, k)),     # dst ids (int32)
                  pl.BlockSpec((te, HP), lambda i, k: (k, 0)),    # m       (bf16)
                  pl.BlockSpec((tn, HP), lambda i, k: (i, 0)),    # nh      (f32)
                  pl.BlockSpec((tn, 1), lambda i, k: (i, 0)),     # 1/deg   (f32)
                  pl.BlockSpec((2 * HP, HP), lambda i, k: (0, 0)),  # Wn    (bf16)
                  pl.BlockSpec((1, HP), lambda i, k: (0, 0))],      # bn    (f32)
        out_specs=pl.BlockSpec((tn, HP), lambda i, k: (i, 0)),
        scratch_shapes=[pltpu.VMEM((tn, HP), jnp.float32)],
        compiler_params=pltpu.CompilerParams(
            dimension_semantics=("parallel", "arbitrary")),
    )(dst_ids, m, nh, inv_deg, wn, bn)


# --------------------- parameter init + full forward -------------------------
def init_params(key, num_layers, num_ntypes, emb_dim, out_dim, efeat_dim):
    ks = iter(jax.random.split(key, 8 + 4 * num_layers))

    def w(k, shape):
        return 0.1 * jax.random.normal(k, shape, jnp.float32)

    p = {
        "node_emb": w(next(ks), (num_ntypes, emb_dim)),
        "ne_w": w(next(ks), (emb_dim, emb_dim)), "ne_b": jnp.zeros((emb_dim,), jnp.float32),
        "ee_w1": w(next(ks), (efeat_dim, emb_dim)), "ee_b1": jnp.zeros((emb_dim,), jnp.float32),
        "ee_w2": w(next(ks), (emb_dim, emb_dim)), "ee_b2": jnp.zeros((emb_dim,), jnp.float32),
        "nd_w1": w(next(ks), (emb_dim, emb_dim)), "nd_b1": jnp.zeros((emb_dim,), jnp.float32),
        "nd_w2": w(next(ks), (emb_dim, emb_dim)), "nd_b2": jnp.zeros((emb_dim,), jnp.float32),
        "nd_w3": w(next(ks), (emb_dim, out_dim)), "nd_b3": jnp.zeros((out_dim,), jnp.float32),
        "layers": [],
    }
    for _ in range(num_layers):
        p["layers"].append({
            "we": w(next(ks), (3 * emb_dim, emb_dim)), "be": jnp.zeros((emb_dim,), jnp.float32),
            "wn": w(next(ks), (2 * emb_dim, emb_dim)), "bn": jnp.zeros((emb_dim,), jnp.float32),
        })
    return p


def gcn_edge_forward(params, nfeats, efeats, src, dst):
    # nfeats: [N, 1] int32 node-type ids; efeats: [E, efeat_dim] f32
    # TODO(synk): the eweight (edge-weight) path of the reference is not
    # implemented (forward here corresponds to eweight=None).
    emb_dim = params["ne_w"].shape[0]
    out_dim = params["nd_w3"].shape[1]
    n = nfeats.shape[0]
    e = efeats.shape[0]

    n_pad, tn = _row_tiles(n, NODE_TILE)
    e_pad, te = _row_tiles(e, EDGE_TILE)

    f32, bf16 = jnp.float32, jnp.bfloat16

    # ---- pad + cast parameters once (zero padding keeps extra lanes inert) ----
    def pw(w):                      # square weight block -> bf16
        return _pad_to(w, (HP, HP)).astype(bf16)

    def pb(b):                      # bias row -> f32
        return _pad_to(b.reshape(1, -1), (1, HP)).astype(f32)

    hd = emb_dim
    padded_layers = []
    for lp in params["layers"]:
        we, wn = lp["we"], lp["wn"]
        we_cat = jnp.concatenate(                          # (3*HP, HP) bf16, K=384
            [_pad_to(we[:hd], (HP, HP)),
             _pad_to(we[hd:2 * hd], (HP, HP)),
             _pad_to(we[2 * hd:], (HP, HP))], axis=0).astype(bf16)
        wn_cat = jnp.concatenate(                          # (2*HP, HP) bf16, K=256
            [_pad_to(wn[:hd], (HP, HP)),
             _pad_to(wn[hd:], (HP, HP))], axis=0).astype(bf16)
        padded_layers.append(dict(we=we_cat, be=pb(lp["be"]),
                                  wn=wn_cat, bn=pb(lp["bn"])))

    # ---- graph structure, built ONCE and reused by every layer ----------------
    ntypes = nfeats.squeeze(1)
    deg = jnp.zeros((n,), f32).at[dst].add(1.0)
    # zero-fill for 0-in-degree nodes (DGL fn.mean semantics)
    inv_deg = _pad_to((1.0 / jnp.maximum(deg, 1.0))[:, None], (n_pad, 1))
    # padded edges get dst = -1 so they never match any node row in-kernel
    dst_ids = jnp.full((1, e_pad), -1, jnp.int32).at[0, :e].set(dst.astype(jnp.int32))

    # ---- node encoder: Embedding -> ReLU -> Linear -> ReLU (one fused kernel) --
    emb_tbl = _pad_to(params["node_emb"], (params["node_emb"].shape[0], HP))
    emb = _pad_to(jnp.take(emb_tbl, ntypes, axis=0), (n_pad, HP))
    nh = fused_mlp(emb, [(pw(params["ne_w"]), pb(params["ne_b"]))],
                   relu_flags=(True,), relu_input=True, row_tile=tn)

    # ---- edge encoder: Linear -> ReLU -> Linear -> ReLU (one fused kernel) ----
    ef = _pad_to(efeats, (e_pad, HP))
    eh = fused_mlp(ef, [(pw(params["ee_w1"]), pb(params["ee_b1"])),
                        (pw(params["ee_w2"]), pb(params["ee_b2"]))],
                   relu_flags=(True, True), row_tile=te)

    h_list_padded = []
    for lp in padded_layers:
        nh_b = nh.astype(bf16)
        # TODO(synk): src/dst row gathers stay in XLA glue (bf16 to halve the
        # round-trip); an in-kernel DMA / scalar-prefetched row gather would
        # remove this per-layer HBM staging entirely.
        nh_src = _pad_to(jnp.take(nh_b, src, axis=0), (e_pad, HP))
        nh_dst = _pad_to(jnp.take(nh_b, dst, axis=0), (e_pad, HP))
        m, eh = edge_messages(nh_src, eh, nh_dst, lp["we"], lp["be"], te)
        nh = node_aggregate_apply(dst_ids, m, nh, inv_deg,
                                  lp["wn"], lp["bn"], tn, te)
        h_list_padded.append(nh)          # keep padded; slice once at the end
        # TODO(synk): dropout is identity at inference (eval mode); training-time
        # stochastic dropout is not implemented here.

    # ---- node decoder: Linear-ReLU-Linear-ReLU-Linear (one fused kernel) ------
    h = fused_mlp(nh, [(pw(params["nd_w1"]), pb(params["nd_b1"])),
                       (pw(params["nd_w2"]), pb(params["nd_b2"])),
                       (pw(params["nd_w3"]), pb(params["nd_b3"]))],
                  relu_flags=(True, True, False), row_tile=tn)

    h_list = [x[:n, :emb_dim] for x in h_list_padded]
    return h_list, h[:n, :out_dim]


if __name__ == "__main__":
    num_layers, num_ntypes = 2, 5
    emb_dim, out_dim, efeat_dim = 32, 8, 4
    N, E = 16, 32

    key = jax.random.PRNGKey(0)
    kp, kn, ke, ks, kd = jax.random.split(key, 5)

    params = init_params(kp, num_layers, num_ntypes, emb_dim, out_dim, efeat_dim)
    nfeats = jax.random.randint(kn, (N, 1), 0, num_ntypes, dtype=jnp.int32)
    efeats = jax.random.normal(ke, (E, efeat_dim), jnp.float32)
    src = jax.random.randint(ks, (E,), 0, N, dtype=jnp.int32)
    dst = jax.random.randint(kd, (E,), 0, N, dtype=jnp.int32)

    h_list, h = gcn_edge_forward(params, nfeats, efeats, src, dst)
    jax.block_until_ready(h)
    jax.block_until_ready(h_list)
    assert h.shape == (N, out_dim)
    assert len(h_list) == num_layers and h_list[0].shape == (N, emb_dim)
    print("KERNEL_OK")
</pallas_src>

<mosaic_0001>
module attributes {stable_mosaic.version = 11 : i64} {
  func.func @_mlp_kernel(%arg0: i32, %arg1: memref<16x128xf32, #tpu.memory_space<vmem>>, %arg2: memref<128x128xbf16, #tpu.memory_space<vmem>>, %arg3: memref<1x128xf32, #tpu.memory_space<vmem>>, %arg4: memref<16x128xf32, #tpu.memory_space<vmem>>) attributes {dimension_semantics = [#tpu.dimension_semantics<parallel>], iteration_bounds = array<i64: 1>, scalar_prefetch = 0 : i64, scratch_operands = 0 : i64, tpu.core_type = #tpu.core_type<tc>, window_params = [{transform_indices = @transform_0, window_bounds = array<i64: 16, 128>}, {pipeline_mode = #tpu.pipeline_mode<synchronous>, transform_indices = @transform_1, window_bounds = array<i64: 128, 128>}, {pipeline_mode = #tpu.pipeline_mode<synchronous>, transform_indices = @transform_2, window_bounds = array<i64: 1, 128>}, {transform_indices = @transform_3, window_bounds = array<i64: 16, 128>}]} {
    %c0 = arith.constant 0 : index
    %c0_0 = arith.constant 0 : index
    %0 = vector.load %arg1[%c0, %c0_0] : memref<16x128xf32, #tpu.memory_space<vmem>>, vector<16x128xf32>
    %cst = arith.constant 0.000000e+00 : f32
    %1 = vector.broadcast %cst : f32 to vector<16x128xf32>
    %2 = arith.maximumf %0, %1 : vector<16x128xf32>
    %c0_1 = arith.constant 0 : index
    %c0_2 = arith.constant 0 : index
    %3 = vector.load %arg2[%c0_1, %c0_2] : memref<128x128xbf16, #tpu.memory_space<vmem>>, vector<128x128xbf16>
    %c0_3 = arith.constant 0 : index
    %c0_4 = arith.constant 0 : index
    %4 = vector.load %arg3[%c0_3, %c0_4] : memref<1x128xf32, #tpu.memory_space<vmem>>, vector<1x128xf32>
    %5 = arith.truncf %2 : vector<16x128xf32> to vector<16x128xbf16>
    %cst_5 = arith.constant dense<0.000000e+00> : vector<16x128xf32>
    %6 = tpu.matmul %5, %3, %cst_5 {dimension_numbers = #tpu.dot_dimension_numbers<[1], [0], [0], [1], [0, 0, 1, 1], [], []>} : vector<16x128xbf16>, vector<128x128xbf16>, vector<16x128xf32> -> vector<16x128xf32>
    %7 = vector.broadcast %4 : vector<1x128xf32> to vector<16x128xf32>
    %8 = arith.addf %6, %7 : vector<16x128xf32>
    %cst_6 = arith.constant 0.000000e+00 : f32
    %9 = vector.broadcast %cst_6 : f32 to vector<16x128xf32>
    %10 = arith.maximumf %8, %9 : vector<16x128xf32>
    %c0_7 = arith.constant 0 : index
    %c0_8 = arith.constant 0 : index
    %11 = vector.load %arg4[%c0_7, %c0_8] : memref<16x128xf32, #tpu.memory_space<vmem>>, vector<16x128xf32>
    tpu.vector_store %arg4[%c0_7, %c0_8], %10 {strides = array<i32>} : memref<16x128xf32, #tpu.memory_space<vmem>>, vector<16x128xf32>,
    return
  }
  func.func @transform_0(%arg0: i32) -> (i32, i32) {
    %c0_i32 = arith.constant 0 : i32
    %c0_i32_0 = arith.constant 0 : i32
    return %arg0, %c0_i32 : i32, i32
  }
  func.func @transform_1(%arg0: i32) -> (i32, i32) {
    %c0_i32 = arith.constant 0 : i32
    %c0_i32_0 = arith.constant 0 : i32
    %c0_i32_1 = arith.constant 0 : i32
    return %c0_i32, %c0_i32_0 : i32, i32
  }
  func.func @transform_2(%arg0: i32) -> (i32, i32) {
    %c0_i32 = arith.constant 0 : i32
    %c0_i32_0 = arith.constant 0 : i32
    %c0_i32_1 = arith.constant 0 : i32
    return %c0_i32, %c0_i32_0 : i32, i32
  }
  func.func @transform_3(%arg0: i32) -> (i32, i32) {
    %c0_i32 = arith.constant 0 : i32
    %c0_i32_0 = arith.constant 0 : i32
    return %arg0, %c0_i32 : i32, i32
  }
}

</mosaic_0001>

<llo_original>
// kernel: tpu_custom_call.1
$region0: #{tpu_custom_call.1}
  #allocation0 [shape = 'u32[]', space=smem, size = 0x4, offset = 0x4, fixed_abs, tag = 'smem constant byte address 0x4 - core index']
  #allocation1 [shape = 'u32[144,128]{1,0:T(1,128)}', space=vmem, size = 0x12000, scoped, tag = 'internal scratch']
  %s0 = inlined_call_operand.hbm [shape: f32[16,128], index: 0, kind: input, shape index: {}]
  %s1 = inlined_call_operand.hbm [shape: bf16[128,128], index: 1, kind: input, shape index: {}]
  %s2 = inlined_call_operand.vmem [shape: f32[1,128], index: 2, kind: input, shape index: {}]
  %s3 = inlined_call_operand.hbm [shape: f32[16,128], index: 3, kind: output, shape index: {}]
  %s4 = sld [smem:[#allocation0]]
  $region30: #{tpu_custom_call.1} parent=0
    _
  %s6 = ssub.s32 1, %s4
  %s7 = scalar_select 0, %s6, %s4
  $region1: #{tpu_custom_call.1} parent=0
    #allocation2 [shape = 'u8[8192]{0}', space=vmem, size = 0x2000, scoped, tag = 'input window, operand 0, single buffered']
    #allocation3 [shape = 's32[1]{0}', space=sflag, size = 0x4, scoped, tag = 'scoped memory for tpu_custom_call.1']
    #allocation4 [shape = 's32[1]{0}', space=sflag, size = 0x4, scoped, tag = 'scoped memory for tpu_custom_call.1']
    #allocation5 [shape = 'u8[32768]{0}', space=vmem, size = 0x8000, scoped, tag = 'input window, operand 1, single buffered']
    #allocation6 [shape = 's32[1]{0}', space=sflag, size = 0x4, scoped, tag = 'scoped memory for tpu_custom_call.1']
    #allocation7 [shape = 'u8[8192]{0}', space=vmem, size = 0x2000, scoped, tag = 'output window, operand 0, single buffered']
    %8 = vsyncpa [#allocation3], 0
    %9 = vsyncpa [#allocation6], 0
    %10 = vsyncpa [#allocation4], 0
    // Predicated region
    $region2: #{tpu_custom_call.1} parent=1 // pred_check
      _
    $region3: #{tpu_custom_call.1} parent=1 // pred_check_branch
      %12 = sbr.rel (0) target = $region5
    $region4: #{tpu_custom_call.1} parent=1 // pred_region
      %s14 = ssub.s32 256, 256
      %15 = vsyncadd [#allocation3], %s14
      %s16 = sshll.u32 [#allocation2], 4
      %s17 = int_to_ptr.vmem [resolvable:$true] %s16
      %22 = dma.hbm_to_vmem [thread:$0]  %s0, 256, %s17, [#allocation3], 128, 128, 8
    $region5: #{tpu_custom_call.1} parent=1 // pred_fallthru
      _
    // Predicated region
    $region6: #{tpu_custom_call.1} parent=1 // pred_check
      _
    $region7: #{tpu_custom_call.1} parent=1 // pred_check_branch
      %24 = sbr.rel (0) target = $region9
    $region8: #{tpu_custom_call.1} parent=1 // pred_region
      %s26 = ssub.s32 1024, 1024
      %27 = vsyncadd [#allocation6], %s26
      %s28 = sshll.u32 [#allocation5], 4
      %s29 = int_to_ptr.vmem [resolvable:$true] %s28
      %34 = dma.hbm_to_vmem [thread:$0]  %s1, 1024, %s29, [#allocation6], 64, 64, 4
    $region9: #{tpu_custom_call.1} parent=1 // pred_fallthru
      _
    // Predicated region
    $region10: #{tpu_custom_call.1} parent=1 // pred_check
      _
    $region11: #{tpu_custom_call.1} parent=1 // pred_check_branch
      %36 = sbr.rel (0) target = $region13
    $region12: #{tpu_custom_call.1} parent=1 // pred_region
      _
    $region13: #{tpu_custom_call.1} parent=1 // pred_fallthru
      _
    // Predicated region
    $region14: #{tpu_custom_call.1} parent=1 // pred_check
      _
    $region15: #{tpu_custom_call.1} parent=1 // pred_check_branch
      %38 = sbr.rel (0) target = $region17
    $region16: #{tpu_custom_call.1} parent=1 // pred_region
      %39 = dma.done [#allocation3], 256
    $region17: #{tpu_custom_call.1} parent=1 // pred_fallthru
      _
    // Predicated region
    $region18: #{tpu_custom_call.1} parent=1 // pred_check
      _
    $region19: #{tpu_custom_call.1} parent=1 // pred_check_branch
      %41 = sbr.rel (0) target = $region21
    $region20: #{tpu_custom_call.1} parent=1 // pred_region
      %42 = dma.done [#allocation6], 1024
    $region21: #{tpu_custom_call.1} parent=1 // pred_fallthru
      _
    %v44 = vld [vmem:[#allocation2] sm:$0xff]
    %v45 = vld [vmem:[#allocation2 + $0x8] sm:$0xff]
    %v46 = vmax.f32 %v44, 0.0
    %v47 = vmax.f32 %v45, 0.0
    %v48 = vld [vmem:[#allocation5] sm:$0xf]
    %v49 = vld [vmem:[#allocation5 + $0x4] sm:$0xf]
    %v50 = vld [vmem:[#allocation5 + $0x8] sm:$0xf]
    %v51 = vld [vmem:[#allocation5 + $0xc] sm:$0xf]
    %v52 = vld [vmem:[#allocation5 + $0x10] sm:$0xf]
    %v53 = vld [vmem:[#allocation5 + $0x14] sm:$0xf]
    %v54 = vld [vmem:[#allocation5 + $0x18] sm:$0xf]
    %v55 = vld [vmem:[#allocation5 + $0x1c] sm:$0xf]
    %v56 = vld [vmem:[#allocation5 + $0x20] sm:$0xf]
    %v57 = vld [vmem:[#allocation5 + $0x24] sm:$0xf]
    %v58 = vld [vmem:[#allocation5 + $0x28] sm:$0xf]
    %v59 = vld [vmem:[#allocation5 + $0x2c] sm:$0xf]
    %v60 = vld [vmem:[#allocation5 + $0x30] sm:$0xf]
    %v61 = vld [vmem:[#allocation5 + $0x34] sm:$0xf]
    %v62 = vld [vmem:[#allocation5 + $0x38] sm:$0xf]
    %v63 = vld [vmem:[#allocation5 + $0x3c] sm:$0xf]
    %v64 = vld [vmem:[%s2] sm:$0x1]
    %v65 = vpack.c.bf16 %v47, %v46
    %v67 = vlaneseq
    %v68 = vshrl.u32 %v67, 7
    %v69 = vsub.s32 0, %v68
    %v70 = vrot.slane %v64, %v69
    %v88 = vunpack.c.l.b16 %v48
    %v89 = vunpack.c.l.b16 %v49
    %v90 = vunpack.c.l.b16 %v50
    %v91 = vunpack.c.l.b16 %v51
    %v92 = vunpack.c.l.b16 %v52
    %v93 = vunpack.c.l.b16 %v53
    %v94 = vunpack.c.l.b16 %v54
    %v95 = vunpack.c.l.b16 %v55
    %v96 = vunpack.c.l.b16 %v56
    %v97 = vunpack.c.l.b16 %v57
    %v98 = vunpack.c.l.b16 %v58
    %v99 = vunpack.c.l.b16 %v59
    %v100 = vunpack.c.l.b16 %v60
    %v101 = vunpack.c.l.b16 %v61
    %v102 = vunpack.c.l.b16 %v62
    %v103 = vunpack.c.l.b16 %v63
    %v104 = vpack.c.b16 %v89, %v88
    %v105 = vpack.c.b16 %v91, %v90
    %v106 = vpack.c.b16 %v93, %v92
    %v107 = vpack.c.b16 %v95, %v94
    %v108 = vpack.c.b16 %v97, %v96
    %v109 = vpack.c.b16 %v99, %v98
    %v110 = vpack.c.b16 %v101, %v100
    %v111 = vpack.c.b16 %v103, %v102
    %120 = vmatprep.subr.bf16.mxu0 0
    %121 = vmatpush1.bf16.msra.mxu0 %v111
    %122 = vmatprep.subr.bf16.mxu0 0
    %123 = vmatpush1.bf16.msra.mxu0 %v110
    %124 = vmatprep.subr.bf16.mxu0 0
    %125 = vmatpush1.bf16.msra.mxu0 %v109
    %126 = vmatprep.subr.bf16.mxu0 0
    %127 = vmatpush1.bf16.msra.mxu0 %v108
    %128 = vmatprep.subr.bf16.mxu0 0
    %129 = vmatpush1.bf16.msra.mxu0 %v107
    %130 = vmatprep.subr.bf16.mxu0 0
    %131 = vmatpush1.bf16.msra.mxu0 %v106
    %132 = vmatprep.subr.bf16.mxu0 0
    %133 = vmatpush1.bf16.msra.mxu0 %v105
    %134 = vmatprep.subr.bf16.mxu0 0
    %135 = vmatpush1.bf16.msra.mxu0 %v104
    %136 = vmatprep.subr.bf16.mxu0 0
    %137 = vmatpush2.bf16.msra.mxu0 0
    %138 = vmatprep.subr.bf16.mxu0 0
    %139 = vmatpush2.bf16.msra.mxu0 0
    %140 = vmatprep.subr.bf16.mxu0 0
    %141 = vmatpush2.bf16.msra.mxu0 0
    %142 = vmatprep.subr.bf16.mxu0 0
    %143 = vmatpush2.bf16.msra.mxu0 0
    %144 = vmatprep.subr.bf16.mxu0 0
    %145 = vmatpush2.bf16.msra.mxu0 0
    %146 = vmatprep.subr.bf16.mxu0 0
    %147 = vmatpush2.bf16.msra.mxu0 0
    %148 = vmatprep.subr.bf16.mxu0 0
    %149 = vmatpush2.bf16.msra.mxu0 0
    %150 = vmatprep.subr.bf16.mxu0 0
    %151 = vmatpush2.bf16.msra.mxu0 0
    %152 = vmatprep.mubr.bf16.mxu0 0
    %153 = vmatmul.mubr.bf16.gmra.mxu0 %v65
    %v154 = vpop.f32.mrf.mxu0
    %v155 = vadd.f32 %v70, %v154
    %v156 = vpop.f32.mrf.mxu0
    %v157 = vpop.f32.mrf.mxu0
    %v158 = vadd.f32 %v70, %v157
    %v159 = vpop.f32.mrf.mxu0
    %160 = vdwg.mxu0
    %v161 = vmax.f32 %v155, 0.0
    %v162 = vmax.f32 %v158, 0.0
    %163 = vst [vmem:[#allocation7] sm:$0xff] %v161
    %164 = vst [vmem:[#allocation7 + $0x8] sm:$0xff] %v162
    // Predicated region
    $region22: #{tpu_custom_call.1} parent=1 // pred_check
      _
    $region23: #{tpu_custom_call.1} parent=1 // pred_check_branch
      %166 = sbr.rel (0) target = $region25
    $region24: #{tpu_custom_call.1} parent=1 // pred_region
      %s168 = ssub.s32 256, 256
      %169 = vsyncadd [#allocation4], %s168
      %s170 = sshll.u32 [#allocation7], 4
      %s171 = int_to_ptr.vmem [resolvable:$true] %s170
      %176 = dma.vmem_to_hbm [thread:$0]  %s171, 256, %s3, [#allocation4], 128, 128, 8
    $region25: #{tpu_custom_call.1} parent=1 // pred_fallthru
      _
    // Predicated region
    $region26: #{tpu_custom_call.1} parent=1 // pred_check
      _
    $region27: #{tpu_custom_call.1} parent=1 // pred_check_branch
      %178 = sbr.rel (0) target = $region29
    $region28: #{tpu_custom_call.1} parent=1 // pred_region
      %179 = dma.done [#allocation4], 256
    $region29: #{tpu_custom_call.1} parent=1 // pred_fallthru
      _
    %180 = vsyncpa [#allocation3], 1
    %181 = vsyncpa [#allocation6], 1
    %182 = vsyncpa [#allocation4], 1

</llo_original>
